<compile_context>
chip_gen: v6e
topology: v6e:2x2x1
jax: 0.10.0
libtpu: 0.0.40
codegen_flags: <defaults>
</compile_context>

<pallas_src>
import jax
import jax.numpy as jnp
from jax.experimental import pallas as pl
from jax.experimental.pallas import tpu as pltpu


_NOISE_STD = 0.05 * 1.1  # noise_level = 1  ->  one noisy copy with std = 0.055


# --------------------------------------------------------------------------- #
# Kernels
# --------------------------------------------------------------------------- #
def _l2_normalize(x):
    # No epsilon, matching torch (`img / img.norm(dim=-1, keepdim=True)`):
    # an all-zero row yields Inf/NaN exactly as in the reference module.
    return x * jax.lax.rsqrt(jnp.sum(x * x, axis=-1, keepdims=True))


def _adapter_eval_kernel(x_ref, w_ref, b_ref, o_ref):
    x = x_ref[...].astype(jnp.float32)
    xn = _l2_normalize(x)
    # w_ref is pre-transposed to (in, out), pre-scaled by 0.5 and cast to the MXU
    # dtype (bf16) in the wrapper -> plain row-major contraction on the fast path.
    y = jnp.dot(xn.astype(w_ref.dtype), w_ref[...],
                preferred_element_type=jnp.float32)
    o_ref[...] = (0.5 * x + y + b_ref[...]).astype(o_ref.dtype)


def _adapter_train_kernel(x_ref, n_ref, w_ref, b_ref, o_ref):
    # o_ref block: (2, tm, C); slab 0 = clean adapter output, slab 1 = noisy.
    x = x_ref[...].astype(jnp.float32)
    xa = x + n_ref[...].astype(jnp.float32)          # aug(): x + N(0, 0.055^2)
    tm = x.shape[0]
    # One fused MXU call for the clean + noisy rows (weight pushed once/step).
    xn = jnp.concatenate([_l2_normalize(x), _l2_normalize(xa)], axis=0)
    y = jnp.dot(xn.astype(w_ref.dtype), w_ref[...],
                preferred_element_type=jnp.float32)
    y = y + b_ref[...]
    o_ref[0] = (0.5 * x + y[:tm]).astype(o_ref.dtype)
    o_ref[1] = (0.5 * xa + y[tm:]).astype(o_ref.dtype)


# --------------------------------------------------------------------------- #
# Tiling / wrappers
# --------------------------------------------------------------------------- #
def _round_up(a, b):
    return ((a + b - 1) // b) * b


def _vmem_limit_bytes():
    """Generation-aware scoped-VMEM limit with headroom (48 MiB on v7x's 64 MiB
    per-TC VMEM, 64 MiB on v5e/v6e's 128 MiB)."""
    cap = 128 << 20
    try:
        cap = int(pltpu.get_tpu_info().vmem_capacity_bytes) or cap
    except Exception:
        pass
    return min(64 << 20, (cap * 3) // 4)


def _choose_tm(M, C, x_itemsize, w_itemsize, *, train, vmem_limit):
    """Row-tile size: multiple of 256, capped at 1024, fitting the VMEM budget
    (double-buffered streams + f32 in-body intermediates + resident weight), and
    small enough that the parallel grid keeps >=4 steps for v7x's two cores."""
    if M <= 256:
        return M                                   # single full-extent block
    n_in = 2 if train else 1                       # x (+ noise) streamed tiles
    out_copies = 2 if train else 1
    pipeline_per_row = 2 * (n_in + out_copies) * C * x_itemsize   # double-buffered DMA
    temps_per_row = (10 if train else 5) * C * 4                  # f32 in-body temps
    weight_bytes = 2 * C * C * w_itemsize + 2 * C * 4             # resident (dbl-buffered)
    budget = max(2 << 20, int(vmem_limit * 0.8) - weight_bytes)
    tm = budget // (pipeline_per_row + temps_per_row)
    tm = max(256, min(1024, (tm // 256) * 256))
    # Keep a multi-step grid so the "parallel" axis can shard across TensorCores.
    tm = min(tm, max(256, _round_up(pl.cdiv(M, 4), 256)))
    return tm


def _adapter_pallas_2d(x2d, weight, bias, *, train, rng_key=None,
                       mxu_dtype=jnp.bfloat16):
    """x2d: (M, C) rows; weight: (C, C) torch layout (out, in); bias: (C,).
    Returns (M, C) for eval, (2, M, C) (clean, noisy) for train."""
    M, C = x2d.shape

    # Fold the 0.5 blend factor into the parameters, transpose the torch-layout
    # weight ONCE to (in, out) and cast to bf16 so the kernel's matmul is a plain
    # contraction on the fast MXU path (no per-step XLU transpose, no f32 MXU).
    w_t = jnp.transpose(0.5 * weight.astype(jnp.float32)).astype(mxu_dtype)
    b_half = (0.5 * bias.astype(jnp.float32)).reshape(1, C)

    vmem_limit = _vmem_limit_bytes()
    tm = _choose_tm(M, C, jnp.dtype(x2d.dtype).itemsize,
                    jnp.dtype(mxu_dtype).itemsize,
                    train=train, vmem_limit=vmem_limit)
    grid = (pl.cdiv(M, tm),)

    cparams = pltpu.CompilerParams(
        dimension_semantics=("parallel",),
        vmem_limit_bytes=vmem_limit,
    )

    row_spec = pl.BlockSpec((tm, C), lambda i: (i, 0))   # streamed row tiles
    # Constant index_map -> Pallas keeps weight/bias resident across grid steps.
    # (Could single-buffer via pipeline_mode=pl.Buffered(1); left default for
    #  portability — the VMEM budget above already charges the double buffer.)
    w_spec = pl.BlockSpec((C, C), lambda i: (0, 0))
    b_spec = pl.BlockSpec((1, C), lambda i: (0, 0))

    if train:
        # aug() noise drawn by XLA's RNG (the in-kernel TPU PRNG does not lower
        # on the interpret/CPU path); the noisy add + both adapter applications
        # remain fused in-kernel so x itself is read from HBM only once.
        noise = (_NOISE_STD * jax.random.normal(rng_key, (M, C), jnp.float32)
                 ).astype(x2d.dtype)
        return pl.pallas_call(
            _adapter_train_kernel,
            out_shape=jax.ShapeDtypeStruct((2, M, C), x2d.dtype),
            grid=grid,
            in_specs=[row_spec, row_spec, w_spec, b_spec],
            out_specs=pl.BlockSpec((2, tm, C), lambda i: (0, i, 0)),
            compiler_params=cparams,
        )(x2d, noise, w_t, b_half)

    return pl.pallas_call(
        _adapter_eval_kernel,
        out_shape=jax.ShapeDtypeStruct((M, C), x2d.dtype),
        grid=grid,
        in_specs=[row_spec, w_spec, b_spec],
        out_specs=row_spec,
        compiler_params=cparams,
    )(x2d, w_t, b_half)


def adapter_forward(x, weight, bias, *, is_test=False, noise_key=None, noise_seed=0):
    """Pallas implementation of Adapter.forward.

    x: (N, H, W, C) channels-last features (or any (..., C) when is_test=True).
    weight / bias: nn.Linear(C, C) parameters in torch layout (out, in) / (out,).
    Training path (is_test=False) applies the adapter to [x, x + N(0, 0.055^2)]
    stacked along the batch dim (matches aug() + forward).
    """
    C = x.shape[-1]
    if not is_test:
        if x.ndim != 4:
            raise ValueError("aug() path expects an NHWC input")
        if noise_key is None:
            noise_key = jax.random.PRNGKey(noise_seed)
        N, H, W, _ = x.shape
        out = _adapter_pallas_2d(x.reshape(N * H * W, C), weight, bias,
                                 train=True, rng_key=noise_key)
        # matches torch.stack([clean, noisy], dim=0).view(-1, H, W, C) ordering
        return out.reshape(2 * N, H, W, C)

    orig_shape = x.shape
    out = _adapter_pallas_2d(x.reshape(-1, C), weight, bias, train=False)
    return out.reshape(orig_shape)


# --------------------------------------------------------------------------- #
# Demo / self-test
# --------------------------------------------------------------------------- #
if __name__ == "__main__":
    key = jax.random.PRNGKey(0)
    k_x, k_w, k_b, k_n = jax.random.split(key, 4)

    # Small NHWC input.  C = 128 keeps the channel (lane) dimension dense; the
    # production CLIP embedding dims (512/768/1024) are likewise multiples of 128.
    N, H, W, C = 2, 8, 8, 128
    x = jax.random.normal(k_x, (N, H, W, C), jnp.float32)

    # nn.Linear(C, C)-style init, torch layout (out, in).
    bound = 1.0 / (C ** 0.5)
    weight = jax.random.uniform(k_w, (C, C), jnp.float32, -bound, bound)
    bias = jax.random.uniform(k_b, (C,), jnp.float32, -bound, bound)

    # Training path: aug() + adapter, clean and noisy copies produced per tile.
    out_train = adapter_forward(x, weight, bias, is_test=False, noise_key=k_n)
    out_train = jax.block_until_ready(out_train)
    assert out_train.shape == (2 * N, H, W, C), out_train.shape
    assert bool(jnp.all(jnp.isfinite(out_train)))

    # Eval path + pure-JAX reference check of the adapter math.
    out_eval = adapter_forward(x, weight, bias, is_test=True)
    out_eval = jax.block_until_ready(out_eval)
    x2 = x.reshape(-1, C)
    xn = x2 / jnp.linalg.norm(x2, axis=-1, keepdims=True)
    ref = (0.5 * x2 + 0.5 * (xn @ weight.T + bias)).reshape(N, H, W, C)
    assert out_eval.shape == ref.shape
    # bf16 MXU path -> slightly looser tolerance than pure f32.
    assert bool(jnp.allclose(out_eval, ref, atol=2e-2, rtol=2e-2)), \
        float(jnp.max(jnp.abs(out_eval - ref)))
    # The clean half of the training output must match the eval output.
    assert bool(jnp.allclose(out_train[:N], ref, atol=2e-2, rtol=2e-2))
    # The noisy half must actually differ from the clean half.
    assert not bool(jnp.allclose(out_train[N:], out_train[:N], atol=1e-4))

    print("KERNEL_OK")
</pallas_src>

<mosaic_0001>
module attributes {stable_mosaic.version = 11 : i64} {
  func.func @_adapter_train_kernel(%arg0: i32, %arg1: memref<128x128xf32, #tpu.memory_space<vmem>>, %arg2: memref<128x128xf32, #tpu.memory_space<vmem>>, %arg3: memref<128x128xbf16, #tpu.memory_space<vmem>>, %arg4: memref<1x128xf32, #tpu.memory_space<vmem>>, %arg5: memref<2x128x128xf32, #tpu.memory_space<vmem>>) attributes {dimension_semantics = [#tpu.dimension_semantics<parallel>], iteration_bounds = array<i64: 1>, scalar_prefetch = 0 : i64, scratch_operands = 0 : i64, tpu.core_type = #tpu.core_type<tc>, window_params = [{transform_indices = @transform_0, window_bounds = array<i64: 128, 128>}, {transform_indices = @transform_1, window_bounds = array<i64: 128, 128>}, {pipeline_mode = #tpu.pipeline_mode<synchronous>, transform_indices = @transform_2, window_bounds = array<i64: 128, 128>}, {pipeline_mode = #tpu.pipeline_mode<synchronous>, transform_indices = @transform_3, window_bounds = array<i64: 1, 128>}, {transform_indices = @transform_4, window_bounds = array<i64: 2, 128, 128>}]} {
    %c0 = arith.constant 0 : index
    %c0_0 = arith.constant 0 : index
    %0 = vector.load %arg1[%c0, %c0_0] : memref<128x128xf32, #tpu.memory_space<vmem>>, vector<128x128xf32>
    %c0_1 = arith.constant 0 : index
    %c0_2 = arith.constant 0 : index
    %1 = vector.load %arg2[%c0_1, %c0_2] : memref<128x128xf32, #tpu.memory_space<vmem>>, vector<128x128xf32>
    %2 = arith.addf %0, %1 : vector<128x128xf32>
    %3 = arith.mulf %0, %0 : vector<128x128xf32>
    %cst = arith.constant dense<0.000000e+00> : vector<128xf32>
    %4 = vector.multi_reduction <add>, %3, %cst [1] : vector<128x128xf32> to vector<128xf32>
    %5 = vector.shape_cast %4 : vector<128xf32> to vector<128x1xf32>
    %6 = math.rsqrt %5 : vector<128x1xf32>
    %7 = vector.broadcast %6 : vector<128x1xf32> to vector<128x128xf32>
    %8 = arith.mulf %0, %7 : vector<128x128xf32>
    %9 = arith.mulf %2, %2 : vector<128x128xf32>
    %cst_3 = arith.constant dense<0.000000e+00> : vector<128xf32>
    %10 = vector.multi_reduction <add>, %9, %cst_3 [1] : vector<128x128xf32> to vector<128xf32>
    %11 = vector.shape_cast %10 : vector<128xf32> to vector<128x1xf32>
    %12 = math.rsqrt %11 : vector<128x1xf32>
    %13 = vector.broadcast %12 : vector<128x1xf32> to vector<128x128xf32>
    %14 = arith.mulf %2, %13 : vector<128x128xf32>
    %15 = tpu.concatenate %8, %14 in 0 : vector<128x128xf32>, vector<128x128xf32> -> vector<256x128xf32>
    %16 = arith.truncf %15 : vector<256x128xf32> to vector<256x128xbf16>
    %c0_4 = arith.constant 0 : index
    %c0_5 = arith.constant 0 : index
    %17 = vector.load %arg3[%c0_4, %c0_5] : memref<128x128xbf16, #tpu.memory_space<vmem>>, vector<128x128xbf16>
    %cst_6 = arith.constant dense<0.000000e+00> : vector<256x128xf32>
    %18 = tpu.matmul %16, %17, %cst_6 {dimension_numbers = #tpu.dot_dimension_numbers<[1], [0], [0], [1], [0, 0, 1, 1], [], []>} : vector<256x128xbf16>, vector<128x128xbf16>, vector<256x128xf32> -> vector<256x128xf32>
    %c0_7 = arith.constant 0 : index
    %c0_8 = arith.constant 0 : index
    %19 = vector.load %arg4[%c0_7, %c0_8] : memref<1x128xf32, #tpu.memory_space<vmem>>, vector<1x128xf32>
    %20 = vector.broadcast %19 : vector<1x128xf32> to vector<256x128xf32>
    %21 = arith.addf %18, %20 : vector<256x128xf32>
    %cst_9 = arith.constant 5.000000e-01 : f32
    %22 = vector.broadcast %cst_9 : f32 to vector<128x128xf32>
    %23 = arith.mulf %22, %0 : vector<128x128xf32>
    %24 = vector.extract_strided_slice %21 {offsets = [0, 0], sizes = [128, 128], strides = [1, 1]} : vector<256x128xf32> to vector<128x128xf32>
    %25 = arith.addf %23, %24 : vector<128x128xf32>
    %c0_10 = arith.constant 0 : index
    %c0_11 = arith.constant 0 : index
    %c0_12 = arith.constant 0 : index
    %26 = vector.load %arg5[%c0_10, %c0_11, %c0_12] : memref<2x128x128xf32, #tpu.memory_space<vmem>>, vector<1x128x128xf32>
    %27 = vector.shape_cast %26 : vector<1x128x128xf32> to vector<128x128xf32>
    %28 = vector.shape_cast %25 : vector<128x128xf32> to vector<1x128x128xf32>
    tpu.vector_store %arg5[%c0_10, %c0_11, %c0_12], %28 {strides = array<i32>} : memref<2x128x128xf32, #tpu.memory_space<vmem>>, vector<1x128x128xf32>,
    %cst_13 = arith.constant 5.000000e-01 : f32
    %29 = vector.broadcast %cst_13 : f32 to vector<128x128xf32>
    %30 = arith.mulf %29, %2 : vector<128x128xf32>
    %31 = vector.extract_strided_slice %21 {offsets = [128, 0], sizes = [128, 128], strides = [1, 1]} : vector<256x128xf32> to vector<128x128xf32>
    %32 = arith.addf %30, %31 : vector<128x128xf32>
    %c1 = arith.constant 1 : index
    %c0_14 = arith.constant 0 : index
    %c0_15 = arith.constant 0 : index
    %33 = vector.load %arg5[%c1, %c0_14, %c0_15] : memref<2x128x128xf32, #tpu.memory_space<vmem>>, vector<1x128x128xf32>
    %34 = vector.shape_cast %33 : vector<1x128x128xf32> to vector<128x128xf32>
    %35 = vector.shape_cast %32 : vector<128x128xf32> to vector<1x128x128xf32>
    tpu.vector_store %arg5[%c1, %c0_14, %c0_15], %35 {strides = array<i32>} : memref<2x128x128xf32, #tpu.memory_space<vmem>>, vector<1x128x128xf32>,
    return
  }
  func.func @transform_0(%arg0: i32) -> (i32, i32) {
    %c0_i32 = arith.constant 0 : i32
    %c0_i32_0 = arith.constant 0 : i32
    return %arg0, %c0_i32 : i32, i32
  }
  func.func @transform_1(%arg0: i32) -> (i32, i32) {
    %c0_i32 = arith.constant 0 : i32
    %c0_i32_0 = arith.constant 0 : i32
    return %arg0, %c0_i32 : i32, i32
  }
  func.func @transform_2(%arg0: i32) -> (i32, i32) {
    %c0_i32 = arith.constant 0 : i32
    %c0_i32_0 = arith.constant 0 : i32
    %c0_i32_1 = arith.constant 0 : i32
    return %c0_i32, %c0_i32_0 : i32, i32
  }
  func.func @transform_3(%arg0: i32) -> (i32, i32) {
    %c0_i32 = arith.constant 0 : i32
    %c0_i32_0 = arith.constant 0 : i32
    %c0_i32_1 = arith.constant 0 : i32
    return %c0_i32, %c0_i32_0 : i32, i32
  }
  func.func @transform_4(%arg0: i32) -> (i32, i32, i32) {
    %c0_i32 = arith.constant 0 : i32
    %c0_i32_0 = arith.constant 0 : i32
    %c0_i32_1 = arith.constant 0 : i32
    return %c0_i32, %arg0, %c0_i32_0 : i32, i32, i32
  }
}

</mosaic_0001>

<llo_original>
// kernel: tpu_custom_call.1
$region0: #{tpu_custom_call.1}
  #allocation0 [shape = 'u32[]', space=smem, size = 0x4, offset = 0x4, fixed_abs, tag = 'smem constant byte address 0x4 - core index']
  #allocation1 [shape = 'u32[144,128]{1,0:T(1,128)}', space=vmem, size = 0x12000, scoped, tag = 'internal scratch']
  %s0 = inlined_call_operand.hbm [shape: f32[128,128], index: 0, kind: input, shape index: {}]
  %s1 = inlined_call_operand.hbm [shape: f32[128,128], index: 1, kind: input, shape index: {}]
  %s2 = inlined_call_operand.hbm [shape: bf16[128,128], index: 2, kind: input, shape index: {}]
  %s3 = inlined_call_operand.vmem [shape: f32[1,128], index: 3, kind: input, shape index: {}]
  %s4 = inlined_call_operand.hbm [shape: f32[2,128,128], index: 4, kind: output, shape index: {}]
  %s5 = sld [smem:[#allocation0]]
  $region38: #{tpu_custom_call.1} parent=0
    _
  %s7 = ssub.s32 1, %s5
  %s8 = scalar_select 0, %s7, %s5
  $region1: #{tpu_custom_call.1} parent=0
    #allocation2 [shape = 'u8[65536]{0}', space=vmem, size = 0x10000, scoped, tag = 'input window, operand 0, single buffered']
    #allocation3 [shape = 's32[1]{0}', space=sflag, size = 0x4, scoped, tag = 'scoped memory for tpu_custom_call.1']
    #allocation4 [shape = 's32[1]{0}', space=sflag, size = 0x4, scoped, tag = 'scoped memory for tpu_custom_call.1']
    #allocation5 [shape = 'u8[65536]{0}', space=vmem, size = 0x10000, scoped, tag = 'input window, operand 1, single buffered']
    #allocation6 [shape = 's32[1]{0}', space=sflag, size = 0x4, scoped, tag = 'scoped memory for tpu_custom_call.1']
    #allocation7 [shape = 'u8[32768]{0}', space=vmem, size = 0x8000, scoped, tag = 'input window, operand 2, single buffered']
    #allocation8 [shape = 'u8[131072]{0}', space=vmem, size = 0x20000, scoped, tag = 'output window, operand 0, single buffered']
    %9 = vsyncpa [#allocation3], 0
    %10 = vsyncpa [#allocation6], 0
    %11 = vsyncpa [#allocation4], 0
    // Predicated region
    $region2: #{tpu_custom_call.1} parent=1 // pred_check
      _
    $region3: #{tpu_custom_call.1} parent=1 // pred_check_branch
      %13 = sbr.rel (0) target = $region5
    $region4: #{tpu_custom_call.1} parent=1 // pred_region
      %s15 = ssub.s32 2048, 2048
      %16 = vsyncadd [#allocation3], %s15
      %s17 = sshll.u32 [#allocation2], 4
      %s18 = int_to_ptr.vmem [resolvable:$true] %s17
      %23 = dma.hbm_to_vmem [thread:$0]  %s0, 2048, %s18, [#allocation3], 128, 128, 8
    $region5: #{tpu_custom_call.1} parent=1 // pred_fallthru
      _
    // Predicated region
    $region6: #{tpu_custom_call.1} parent=1 // pred_check
      _
    $region7: #{tpu_custom_call.1} parent=1 // pred_check_branch
      %25 = sbr.rel (0) target = $region9
    $region8: #{tpu_custom_call.1} parent=1 // pred_region
      %s27 = ssub.s32 2048, 2048
      %28 = vsyncadd [#allocation6], %s27
      %s29 = sshll.u32 [#allocation5], 4
      %s30 = int_to_ptr.vmem [resolvable:$true] %s29
      %35 = dma.hbm_to_vmem [thread:$0]  %s1, 2048, %s30, [#allocation6], 128, 128, 8
    $region9: #{tpu_custom_call.1} parent=1 // pred_fallthru
      _
    // Predicated region
    $region10: #{tpu_custom_call.1} parent=1 // pred_check
      _
    $region11: #{tpu_custom_call.1} parent=1 // pred_check_branch
      %37 = sbr.rel (0) target = $region13
    $region12: #{tpu_custom_call.1} parent=1 // pred_region
      %s39 = ssub.s32 1024, 1024
      %40 = vsyncadd [#allocation6], %s39
      %s41 = sshll.u32 [#allocation7], 4
      %s42 = int_to_ptr.vmem [resolvable:$true] %s41
      %47 = dma.hbm_to_vmem [thread:$0]  %s2, 1024, %s42, [#allocation6], 64, 64, 4
    $region13: #{tpu_custom_call.1} parent=1 // pred_fallthru
      _
    // Predicated region
    $region14: #{tpu_custom_call.1} parent=1 // pred_check
      _
    $region15: #{tpu_custom_call.1} parent=1 // pred_check_branch
      %49 = sbr.rel (0) target = $region17
    $region16: #{tpu_custom_call.1} parent=1 // pred_region
      _
    $region17: #{tpu_custom_call.1} parent=1 // pred_fallthru
      _
    // Predicated region
    $region18: #{tpu_custom_call.1} parent=1 // pred_check
      _
    $region19: #{tpu_custom_call.1} parent=1 // pred_check_branch
      %51 = sbr.rel (0) target = $region21
    $region20: #{tpu_custom_call.1} parent=1 // pred_region
      %52 = dma.done [#allocation3], 2048
    $region21: #{tpu_custom_call.1} parent=1 // pred_fallthru
      _
    // Predicated region
    $region22: #{tpu_custom_call.1} parent=1 // pred_check
      _
    $region23: #{tpu_custom_call.1} parent=1 // pred_check_branch
      %54 = sbr.rel (0) target = $region25
    $region24: #{tpu_custom_call.1} parent=1 // pred_region
      %55 = dma.done [#allocation6], 2048
    $region25: #{tpu_custom_call.1} parent=1 // pred_fallthru
      _
    // Predicated region
    $region26: #{tpu_custom_call.1} parent=1 // pred_check
      _
    $region27: #{tpu_custom_call.1} parent=1 // pred_check_branch
      %57 = sbr.rel (0) target = $region29
    $region28: #{tpu_custom_call.1} parent=1 // pred_region
      %58 = dma.done [#allocation6], 1024
    $region29: #{tpu_custom_call.1} parent=1 // pred_fallthru
      _
    %v60 = vld [vmem:[#allocation2] sm:$0xff]
    %v61 = vld [vmem:[#allocation2 + $0x8] sm:$0xff]
    %v62 = vld [vmem:[#allocation2 + $0x10] sm:$0xff]
    %v63 = vld [vmem:[#allocation2 + $0x18] sm:$0xff]
    %v64 = vld [vmem:[#allocation2 + $0x20] sm:$0xff]
    %v65 = vld [vmem:[#allocation2 + $0x28] sm:$0xff]
    %v66 = vld [vmem:[#allocation2 + $0x30] sm:$0xff]
    %v67 = vld [vmem:[#allocation2 + $0x38] sm:$0xff]
    %v68 = vld [vmem:[#allocation2 + $0x40] sm:$0xff]
    %v69 = vld [vmem:[#allocation2 + $0x48] sm:$0xff]
    %v70 = vld [vmem:[#allocation2 + $0x50] sm:$0xff]
    %v71 = vld [vmem:[#allocation2 + $0x58] sm:$0xff]
    %v72 = vld [vmem:[#allocation2 + $0x60] sm:$0xff]
    %v73 = vld [vmem:[#allocation2 + $0x68] sm:$0xff]
    %v74 = vld [vmem:[#allocation2 + $0x70] sm:$0xff]
    %v75 = vld [vmem:[#allocation2 + $0x78] sm:$0xff]
    %v76 = vld [vmem:[#allocation5] sm:$0xff]
    %v77 = vld [vmem:[#allocation5 + $0x8] sm:$0xff]
    %v78 = vld [vmem:[#allocation5 + $0x10] sm:$0xff]
    %v79 = vld [vmem:[#allocation5 + $0x18] sm:$0xff]
    %v80 = vld [vmem:[#allocation5 + $0x20] sm:$0xff]
    %v81 = vld [vmem:[#allocation5 + $0x28] sm:$0xff]
    %v82 = vld [vmem:[#allocation5 + $0x30] sm:$0xff]
    %v83 = vld [vmem:[#allocation5 + $0x38] sm:$0xff]
    %v84 = vld [vmem:[#allocation5 + $0x40] sm:$0xff]
    %v85 = vld [vmem:[#allocation5 + $0x48] sm:$0xff]
    %v86 = vld [vmem:[#allocation5 + $0x50] sm:$0xff]
    %v87 = vld [vmem:[#allocation5 + $0x58] sm:$0xff]
    %v88 = vld [vmem:[#allocation5 + $0x60] sm:$0xff]
    %v89 = vld [vmem:[#allocation5 + $0x68] sm:$0xff]
    %v90 = vld [vmem:[#allocation5 + $0x70] sm:$0xff]
    %v91 = vld [vmem:[#allocation5 + $0x78] sm:$0xff]
    %v92 = vadd.f32 %v60, %v76
    %v93 = vadd.f32 %v61, %v77
    %v94 = vadd.f32 %v62, %v78
    %v95 = vadd.f32 %v63, %v79
    %v96 = vadd.f32 %v64, %v80
    %v97 = vadd.f32 %v65, %v81
    %v98 = vadd.f32 %v66, %v82
    %v99 = vadd.f32 %v67, %v83
    %v100 = vadd.f32 %v68, %v84
    %v101 = vadd.f32 %v69, %v85
    %v102 = vadd.f32 %v70, %v86
    %v103 = vadd.f32 %v71, %v87
    %v104 = vadd.f32 %v72, %v88
    %v105 = vadd.f32 %v73, %v89
    %v106 = vadd.f32 %v74, %v90
    %v107 = vadd.f32 %v75, %v91
    %v108 = vmul.f32 %v60, %v60
    %v109 = vmul.f32 %v61, %v61
    %v110 = vmul.f32 %v62, %v62
    %v111 = vmul.f32 %v63, %v63
    %v112 = vmul.f32 %v64, %v64
    %v113 = vmul.f32 %v65, %v65
    %v114 = vmul.f32 %v66, %v66
    %v115 = vmul.f32 %v67, %v67
    %v116 = vmul.f32 %v68, %v68
    %v117 = vmul.f32 %v69, %v69
    %v118 = vmul.f32 %v70, %v70
    %v119 = vmul.f32 %v71, %v71
    %v120 = vmul.f32 %v72, %v72
    %v121 = vmul.f32 %v73, %v73
    %v122 = vmul.f32 %v74, %v74
    %v123 = vmul.f32 %v75, %v75
    %124 = vadd.xlane.f32.xlu0 %v108
    %v125 = vpop.xlane.xlu0 %124
    %126 = vadd.xlane.f32.xlu0 %v109
    %v127 = vpop.xlane.xlu0 %126
    %128 = vadd.xlane.f32.xlu0 %v110
    %v129 = vpop.xlane.xlu0 %128
    %130 = vadd.xlane.f32.xlu0 %v111
    %v131 = vpop.xlane.xlu0 %130
    %132 = vadd.xlane.f32.xlu0 %v112
    %v133 = vpop.xlane.xlu0 %132
    %134 = vadd.xlane.f32.xlu0 %v113
    %v135 = vpop.xlane.xlu0 %134
    %136 = vadd.xlane.f32.xlu0 %v114
    %v137 = vpop.xlane.xlu0 %136
    %138 = vadd.xlane.f32.xlu0 %v115
    %v139 = vpop.xlane.xlu0 %138
    %140 = vadd.xlane.f32.xlu0 %v116
    %v141 = vpop.xlane.xlu0 %140
    %142 = vadd.xlane.f32.xlu0 %v117
    %v143 = vpop.xlane.xlu0 %142
    %144 = vadd.xlane.f32.xlu0 %v118
    %v145 = vpop.xlane.xlu0 %144
    %146 = vadd.xlane.f32.xlu0 %v119
    %v147 = vpop.xlane.xlu0 %146
    %148 = vadd.xlane.f32.xlu0 %v120
    %v149 = vpop.xlane.xlu0 %148
    %150 = vadd.xlane.f32.xlu0 %v121
    %v151 = vpop.xlane.xlu0 %150
    %152 = vadd.xlane.f32.xlu0 %v122
    %v153 = vpop.xlane.xlu0 %152
    %154 = vadd.xlane.f32.xlu0 %v123
    %v155 = vpop.xlane.xlu0 %154
    %v156 = vrsqrt.pop %v125
    %v157 = vrsqrt.pop %v127
    %v158 = vrsqrt.pop %v129
    %v159 = vrsqrt.pop %v131
    %v160 = vrsqrt.pop %v133
    %v161 = vrsqrt.pop %v135
    %v162 = vrsqrt.pop %v137
    %v163 = vrsqrt.pop %v139
    %v164 = vrsqrt.pop %v141
    %v165 = vrsqrt.pop %v143
    %v166 = vrsqrt.pop %v145
    %v167 = vrsqrt.pop %v147
    %v168 = vrsqrt.pop %v149
    %v169 = vrsqrt.pop %v151
    %v170 = vrsqrt.pop %v153
    %v171 = vrsqrt.pop %v155
    %v172 = vmul.f32 %v60, %v156
    %v173 = vmul.f32 %v61, %v157
    %v174 = vmul.f32 %v62, %v158
    %v175 = vmul.f32 %v63, %v159
    %v176 = vmul.f32 %v64, %v160
    %v177 = vmul.f32 %v65, %v161
    %v178 = vmul.f32 %v66, %v162
    %v179 = vmul.f32 %v67, %v163
    %v180 = vmul.f32 %v68, %v164
    %v181 = vmul.f32 %v69, %v165
    %v182 = vmul.f32 %v70, %v166
    %v183 = vmul.f32 %v71, %v167
    %v184 = vmul.f32 %v72, %v168
    %v185 = vmul.f32 %v73, %v169
    %v186 = vmul.f32 %v74, %v170
    %v187 = vmul.f32 %v75, %v171
    %v188 = vmul.f32 %v92, %v92
    %v189 = vmul.f32 %v93, %v93
    %v190 = vmul.f32 %v94, %v94
    %v191 = vmul.f32 %v95, %v95
    %v192 = vmul.f32 %v96, %v96
    %v193 = vmul.f32 %v97, %v97
    %v194 = vmul.f32 %v98, %v98
    %v195 = vmul.f32 %v99, %v99
    %v196 = vmul.f32 %v100, %v100
    %v197 = vmul.f32 %v101, %v101
    %v198 = vmul.f32 %v102, %v102
    %v199 = vmul.f32 %v103, %v103
    %v200 = vmul.f32 %v104, %v104
    %v201 = vmul.f32 %v105, %v105
    %v202 = vmul.f32 %v106, %v106
    %v203 = vmul.f32 %v107, %v107
    %204 = vadd.xlane.f32.xlu0 %v188
    %v205 = vpop.xlane.xlu0 %204
    %206 = vadd.xlane.f32.xlu0 %v189
    %v207 = vpop.xlane.xlu0 %206
    %208 = vadd.xlane.f32.xlu0 %v190
    %v209 = vpop.xlane.xlu0 %208
    %210 = vadd.xlane.f32.xlu0 %v191
    %v211 = vpop.xlane.xlu0 %210
    %212 = vadd.xlane.f32.xlu0 %v192
    %v213 = vpop.xlane.xlu0 %212
    %214 = vadd.xlane.f32.xlu0 %v193
    %v215 = vpop.xlane.xlu0 %214
    %216 = vadd.xlane.f32.xlu0 %v194
    %v217 = vpop.xlane.xlu0 %216
    %218 = vadd.xlane.f32.xlu0 %v195
    %v219 = vpop.xlane.xlu0 %218
    %220 = vadd.xlane.f32.xlu0 %v196
    %v221 = vpop.xlane.xlu0 %220
    %222 = vadd.xlane.f32.xlu0 %v197
    %v223 = vpop.xlane.xlu0 %222
    %224 = vadd.xlane.f32.xlu0 %v198
    %v225 = vpop.xlane.xlu0 %224
    %226 = vadd.xlane.f32.xlu0 %v199
    %v227 = vpop.xlane.xlu0 %226
    %228 = vadd.xlane.f32.xlu0 %v200
    %v229 = vpop.xlane.xlu0 %228
    %230 = vadd.xlane.f32.xlu0 %v201
    %v231 = vpop.xlane.xlu0 %230
    %232 = vadd.xlane.f32.xlu0 %v202
    %v233 = vpop.xlane.xlu0 %232
    %234 = vadd.xlane.f32.xlu0 %v203
    %v235 = vpop.xlane.xlu0 %234
    %v236 = vrsqrt.pop %v205
    %v237 = vrsqrt.pop %v207
    %v238 = vrsqrt.pop %v209
    %v239 = vrsqrt.pop %v211
    %v240 = vrsqrt.pop %v213
    %v241 = vrsqrt.pop %v215
    %v242 = vrsqrt.pop %v217
    %v243 = vrsqrt.pop %v219
    %v244 = vrsqrt.pop %v221
    %v245 = vrsqrt.pop %v223
    %v246 = vrsqrt.pop %v225
    %v247 = vrsqrt.pop %v227
    %v248 = vrsqrt.pop %v229
    %v249 = vrsqrt.pop %v231
    %v250 = vrsqrt.pop %v233
    %v251 = vrsqrt.pop %v235
    %v252 = vmul.f32 %v92, %v236
    %v253 = vmul.f32 %v93, %v237
    %v254 = vmul.f32 %v94, %v238
    %v255 = vmul.f32 %v95, %v239
    %v256 = vmul.f32 %v96, %v240
    %v257 = vmul.f32 %v97, %v241
    %v258 = vmul.f32 %v98, %v242
    %v259 = vmul.f32 %v99, %v243
    %v260 = vmul.f32 %v100, %v244
    %v261 = vmul.f32 %v101, %v245
    %v262 = vmul.f32 %v102, %v246
    %v263 = vmul.f32 %v103, %v247
    %v264 = vmul.f32 %v104, %v248
    %v265 = vmul.f32 %v105, %v249
    %v266 = vmul.f32 %v106, %v250
    %v267 = vmul.f32 %v107, %v251
    %v268 = vpack.c.bf16 %v173, %v172
    %v269 = vpack.c.bf16 %v175, %v174
    %v270 = vpack.c.bf16 %v177, %v176
    %v271 = vpack.c.bf16 %v179, %v178
    %v272 = vpack.c.bf16 %v181, %v180
    %v273 = vpack.c.bf16 %v183, %v182
    %v274 = vpack.c.bf16 %v185, %v184
    %v275 = vpack.c.bf16 %v187, %v186
    %v276 = vpack.c.bf16 %v253, %v252
    %v277 = vpack.c.bf16 %v255, %v254
    %v278 = vpack.c.bf16 %v257, %v256
    %v279 = vpack.c.bf16 %v259, %v258
    %v280 = vpack.c.bf16 %v261, %v260
    %v281 = vpack.c.bf16 %v263, %v262
    %v282 = vpack.c.bf16 %v265, %v264
    %v283 = vpack.c.bf16 %v267, %v266
    %v284 = vld [vmem:[#allocation7] sm:$0xf]
    %v285 = vld [vmem:[#allocation7 + $0x4] sm:$0xf]
    %v286 = vld [vmem:[#allocation7 + $0x8] sm:$0xf]
    %v287 = vld [vmem:[#allocation7 + $0xc] sm:$0xf]
    %v288 = vld [vmem:[#allocation7 + $0x10] sm:$0xf]
    %v289 = vld [vmem:[#allocation7 + $0x14] sm:$0xf]
    %v290 = vld [vmem:[#allocation7 + $0x18] sm:$0xf]
    %v291 = vld [vmem:[#allocation7 + $0x1c] sm:$0xf]
    %v292 = vld [vmem:[#allocation7 + $0x20] sm:$0xf]
    %v293 = vld [vmem:[#allocation7 + $0x24] sm:$0xf]
    %v294 = vld [vmem:[#allocation7 + $0x28] sm:$0xf]
    %v295 = vld [vmem:[#allocation7 + $0x2c] sm:$0xf]
    %v296 = vld [vmem:[#allocation7 + $0x30] sm:$0xf]
    %v297 = vld [vmem:[#allocation7 + $0x34] sm:$0xf]
    %v298 = vld [vmem:[#allocation7 + $0x38] sm:$0xf]
    %v299 = vld [vmem:[#allocation7 + $0x3c] sm:$0xf]
    %v300 = vld [vmem:[%s3] sm:$0x1]
    %v302 = vlaneseq
    %v303 = vshrl.u32 %v302, 7
    %v304 = vsub.s32 0, %v303
    %v305 = vrot.slane %v300, %v304
    %v323 = vunpack.c.l.b16 %v284
    %v324 = vunpack.c.l.b16 %v285
    %v325 = vunpack.c.l.b16 %v286
    %v326 = vunpack.c.l.b16 %v287
    %v327 = vunpack.c.l.b16 %v288
    %v328 = vunpack.c.l.b16 %v289
    %v329 = vunpack.c.l.b16 %v290
    %v330 = vunpack.c.l.b16 %v291
    %v331 = vunpack.c.l.b16 %v292
    %v332 = vunpack.c.l.b16 %v293
    %v333 = vunpack.c.l.b16 %v294
    %v334 = vunpack.c.l.b16 %v295
    %v335 = vunpack.c.l.b16 %v296
    %v336 = vunpack.c.l.b16 %v297
    %v337 = vunpack.c.l.b16 %v298
    %v338 = vunpack.c.l.b16 %v299
    %v339 = vpack.c.b16 %v324, %v323
    %v340 = vpack.c.b16 %v326, %v325
    %v341 = vpack.c.b16 %v328, %v327
    %v342 = vpack.c.b16 %v330, %v329
    %v343 = vpack.c.b16 %v332, %v331
    %v344 = vpack.c.b16 %v334, %v333
    %v345 = vpack.c.b16 %v336, %v335
    %v346 = vpack.c.b16 %v338, %v337
    %355 = vmatprep.subr.bf16.mxu0 0
    %356 = vmatpush1.bf16.msra.mxu0 %v346
    %357 = vmatprep.subr.bf16.mxu0 0
    %358 = vmatpush1.bf16.msra.mxu0 %v345
    %359 = vmatprep.subr.bf16.mxu0 0
    %360 = vmatpush1.bf16.msra.mxu0 %v344
    %361 = vmatprep.subr.bf16.mxu0 0
    %362 = vmatpush1.bf16.msra.mxu0 %v343
    %363 = vmatprep.subr.bf16.mxu0 0
    %364 = vmatpush1.bf16.msra.mxu0 %v342
    %365 = vmatprep.subr.bf16.mxu0 0
    %366 = vmatpush1.bf16.msra.mxu0 %v341
    %367 = vmatprep.subr.bf16.mxu0 0
    %368 = vmatpush1.bf16.msra.mxu0 %v340
    %369 = vmatprep.subr.bf16.mxu0 0
    %370 = vmatpush1.bf16.msra.mxu0 %v339
    %371 = vmatprep.subr.bf16.mxu0 0
    %372 = vmatpush2.bf16.msra.mxu0 0
    %373 = vmatprep.subr.bf16.mxu0 0
    %374 = vmatpush2.bf16.msra.mxu0 0
    %375 = vmatprep.subr.bf16.mxu0 0
    %376 = vmatpush2.bf16.msra.mxu0 0
    %377 = vmatprep.subr.bf16.mxu0 0
    %378 = vmatpush2.bf16.msra.mxu0 0
    %379 = vmatprep.subr.bf16.mxu0 0
    %380 = vmatpush2.bf16.msra.mxu0 0
    %381 = vmatprep.subr.bf16.mxu0 0
    %382 = vmatpush2.bf16.msra.mxu0 0
    %383 = vmatprep.subr.bf16.mxu0 0
    %384 = vmatpush2.bf16.msra.mxu0 0
    %385 = vmatprep.subr.bf16.mxu0 0
    %386 = vmatpush2.bf16.msra.mxu0 0
    %387 = vmatprep.mubr.bf16.mxu0 0
    %388 = vmatmul.mubr.bf16.gmra.mxu0 %v268
    %v389 = vpop.f32.mrf.mxu0
    %v390 = vadd.f32 %v305, %v389
    %v391 = vpop.f32.mrf.mxu0
    %v392 = vpop.f32.mrf.mxu0
    %v393 = vadd.f32 %v305, %v392
    %v394 = vpop.f32.mrf.mxu0
    %395 = vmatprep.mubr.bf16.mxu0 0
    %396 = vmatmul.mubr.bf16.gmra.mxu0 %v269
    %v397 = vpop.f32.mrf.mxu0
    %v398 = vadd.f32 %v305, %v397
    %v399 = vpop.f32.mrf.mxu0
    %v400 = vpop.f32.mrf.mxu0
    %v401 = vadd.f32 %v305, %v400
    %v402 = vpop.f32.mrf.mxu0
    %403 = vmatprep.mubr.bf16.mxu0 0
    %404 = vmatmul.mubr.bf16.gmra.mxu0 %v270
    %v405 = vpop.f32.mrf.mxu0
    %v406 = vadd.f32 %v305, %v405
    %v407 = vpop.f32.mrf.mxu0
    %v408 = vpop.f32.mrf.mxu0
    %v409 = vadd.f32 %v305, %v408
    %v410 = vpop.f32.mrf.mxu0
    %411 = vmatprep.mubr.bf16.mxu0 0
    %412 = vmatmul.mubr.bf16.gmra.mxu0 %v271
    %v413 = vpop.f32.mrf.mxu0
    %v414 = vadd.f32 %v305, %v413
    %v415 = vpop.f32.mrf.mxu0
    %v416 = vpop.f32.mrf.mxu0
    %v417 = vadd.f32 %v305, %v416
    %v418 = vpop.f32.mrf.mxu0
    %419 = vmatprep.mubr.bf16.mxu0 0
    %420 = vmatmul.mubr.bf16.gmra.mxu0 %v272
    %v421 = vpop.f32.mrf.mxu0
    %v422 = vadd.f32 %v305, %v421
    %v423 = vpop.f32.mrf.mxu0
    %v424 = vpop.f32.mrf.mxu0
    %v425 = vadd.f32 %v305, %v424
    %v426 = vpop.f32.mrf.mxu0
    %427 = vmatprep.mubr.bf16.mxu0 0
    %428 = vmatmul.mubr.bf16.gmra.mxu0 %v273
    %v429 = vpop.f32.mrf.mxu0
    %v430 = vadd.f32 %v305, %v429
    %v431 = vpop.f32.mrf.mxu0
    %v432 = vpop.f32.mrf.mxu0
    %v433 = vadd.f32 %v305, %v432
    %v434 = vpop.f32.mrf.mxu0
    %435 = vmatprep.mubr.bf16.mxu0 0
    %436 = vmatmul.mubr.bf16.gmra.mxu0 %v274
    %v437 = vpop.f32.mrf.mxu0
    %v438 = vadd.f32 %v305, %v437
    %v439 = vpop.f32.mrf.mxu0
    %v440 = vpop.f32.mrf.mxu0
    %v441 = vadd.f32 %v305, %v440
    %v442 = vpop.f32.mrf.mxu0
    %443 = vmatprep.mubr.bf16.mxu0 0
    %444 = vmatmul.mubr.bf16.gmra.mxu0 %v275
    %v445 = vpop.f32.mrf.mxu0
    %v446 = vadd.f32 %v305, %v445
    %v447 = vpop.f32.mrf.mxu0
    %v448 = vpop.f32.mrf.mxu0
    %v449 = vadd.f32 %v305, %v448
    %v450 = vpop.f32.mrf.mxu0
    %451 = vmatprep.mubr.bf16.mxu0 0
    %452 = vmatmul.mubr.bf16.gmra.mxu0 %v276
    %v453 = vpop.f32.mrf.mxu0
    %v454 = vadd.f32 %v305, %v453
    %v455 = vpop.f32.mrf.mxu0
    %v456 = vpop.f32.mrf.mxu0
    %v457 = vadd.f32 %v305, %v456
    %v458 = vpop.f32.mrf.mxu0
    %459 = vmatprep.mubr.bf16.mxu0 0
    %460 = vmatmul.mubr.bf16.gmra.mxu0 %v277
    %v461 = vpop.f32.mrf.mxu0
    %v462 = vadd.f32 %v305, %v461
    %v463 = vpop.f32.mrf.mxu0
    %v464 = vpop.f32.mrf.mxu0
    %v465 = vadd.f32 %v305, %v464
    %v466 = vpop.f32.mrf.mxu0
    %467 = vmatprep.mubr.bf16.mxu0 0
    %468 = vmatmul.mubr.bf16.gmra.mxu0 %v278
    %v469 = vpop.f32.mrf.mxu0
    %v470 = vadd.f32 %v305, %v469
    %v471 = vpop.f32.mrf.mxu0
    %v472 = vpop.f32.mrf.mxu0
    %v473 = vadd.f32 %v305, %v472
    %v474 = vpop.f32.mrf.mxu0
    %475 = vmatprep.mubr.bf16.mxu0 0
    %476 = vmatmul.mubr.bf16.gmra.mxu0 %v279
    %v477 = vpop.f32.mrf.mxu0
    %v478 = vadd.f32 %v305, %v477
    %v479 = vpop.f32.mrf.mxu0
    %v480 = vpop.f32.mrf.mxu0
    %v481 = vadd.f32 %v305, %v480
    %v482 = vpop.f32.mrf.mxu0
    %483 = vmatprep.mubr.bf16.mxu0 0
    %484 = vmatmul.mubr.bf16.gmra.mxu0 %v280
    %v485 = vpop.f32.mrf.mxu0
    %v486 = vadd.f32 %v305, %v485
    %v487 = vpop.f32.mrf.mxu0
    %v488 = vpop.f32.mrf.mxu0
    %v489 = vadd.f32 %v305, %v488
    %v490 = vpop.f32.mrf.mxu0
    %491 = vmatprep.mubr.bf16.mxu0 0
    %492 = vmatmul.mubr.bf16.gmra.mxu0 %v281
    %v493 = vpop.f32.mrf.mxu0
    %v494 = vadd.f32 %v305, %v493
    %v495 = vpop.f32.mrf.mxu0
    %v496 = vpop.f32.mrf.mxu0
    %v497 = vadd.f32 %v305, %v496
    %v498 = vpop.f32.mrf.mxu0
    %499 = vmatprep.mubr.bf16.mxu0 0
    %500 = vmatmul.mubr.bf16.gmra.mxu0 %v282
    %v501 = vpop.f32.mrf.mxu0
    %v502 = vadd.f32 %v305, %v501
    %v503 = vpop.f32.mrf.mxu0
    %v504 = vpop.f32.mrf.mxu0
    %v505 = vadd.f32 %v305, %v504
    %v506 = vpop.f32.mrf.mxu0
    %507 = vmatprep.mubr.bf16.mxu0 0
    %508 = vmatmul.mubr.bf16.gmra.mxu0 %v283
    %v509 = vpop.f32.mrf.mxu0
    %v510 = vadd.f32 %v305, %v509
    %v511 = vpop.f32.mrf.mxu0
    %v512 = vpop.f32.mrf.mxu0
    %v513 = vadd.f32 %v305, %v512
    %v514 = vpop.f32.mrf.mxu0
    %515 = vdwg.mxu0
    %v516 = vmul.f32 %v60, 0.5
    %v517 = vmul.f32 %v61, 0.5
    %v518 = vmul.f32 %v62, 0.5
    %v519 = vmul.f32 %v63, 0.5
    %v520 = vmul.f32 %v64, 0.5
    %v521 = vmul.f32 %v65, 0.5
    %v522 = vmul.f32 %v66, 0.5
    %v523 = vmul.f32 %v67, 0.5
    %v524 = vmul.f32 %v68, 0.5
    %v525 = vmul.f32 %v69, 0.5
    %v526 = vmul.f32 %v70, 0.5
    %v527 = vmul.f32 %v71, 0.5
    %v528 = vmul.f32 %v72, 0.5
    %v529 = vmul.f32 %v73, 0.5
    %v530 = vmul.f32 %v74, 0.5
    %v531 = vmul.f32 %v75, 0.5
    %v532 = vadd.f32 %v516, %v390
    %v533 = vadd.f32 %v517, %v393
    %v534 = vadd.f32 %v518, %v398
    %v535 = vadd.f32 %v519, %v401
    %v536 = vadd.f32 %v520, %v406
    %v537 = vadd.f32 %v521, %v409
    %v538 = vadd.f32 %v522, %v414
    %v539 = vadd.f32 %v523, %v417
    %v540 = vadd.f32 %v524, %v422
    %v541 = vadd.f32 %v525, %v425
    %v542 = vadd.f32 %v526, %v430
    %v543 = vadd.f32 %v527, %v433
    %v544 = vadd.f32 %v528, %v438
    %v545 = vadd.f32 %v529, %v441
    %v546 = vadd.f32 %v530, %v446
    %v547 = vadd.f32 %v531, %v449
    %548 = vst [vmem:[#allocation8] sm:$0xff] %v532
    %549 = vst [vmem:[#allocation8 + $0x8] sm:$0xff] %v533
    %550 = vst [vmem:[#allocation8 + $0x10] sm:$0xff] %v534
    %551 = vst [vmem:[#allocation8 + $0x18] sm:$0xff] %v535
    %552 = vst [vmem:[#allocation8 + $0x20] sm:$0xff] %v536
    %553 = vst [vmem:[#allocation8 + $0x28] sm:$0xff] %v537
    %554 = vst [vmem:[#allocation8 + $0x30] sm:$0xff] %v538
    %555 = vst [vmem:[#allocation8 + $0x38] sm:$0xff] %v539
    %556 = vst [vmem:[#allocation8 + $0x40] sm:$0xff] %v540
    %557 = vst [vmem:[#allocation8 + $0x48] sm:$0xff] %v541
    %558 = vst [vmem:[#allocation8 + $0x50] sm:$0xff] %v542
    %559 = vst [vmem:[#allocation8 + $0x58] sm:$0xff] %v543
    %560 = vst [vmem:[#allocation8 + $0x60] sm:$0xff] %v544
    %561 = vst [vmem:[#allocation8 + $0x68] sm:$0xff] %v545
    %562 = vst [vmem:[#allocation8 + $0x70] sm:$0xff] %v546
    %563 = vst [vmem:[#allocation8 + $0x78] sm:$0xff] %v547
    %v564 = vmul.f32 %v92, 0.5
    %v565 = vmul.f32 %v93, 0.5
    %v566 = vmul.f32 %v94, 0.5
    %v567 = vmul.f32 %v95, 0.5
    %v568 = vmul.f32 %v96, 0.5
    %v569 = vmul.f32 %v97, 0.5
    %v570 = vmul.f32 %v98, 0.5
    %v571 = vmul.f32 %v99, 0.5
    %v572 = vmul.f32 %v100, 0.5
    %v573 = vmul.f32 %v101, 0.5
    %v574 = vmul.f32 %v102, 0.5
    %v575 = vmul.f32 %v103, 0.5
    %v576 = vmul.f32 %v104, 0.5
    %v577 = vmul.f32 %v105, 0.5
    %v578 = vmul.f32 %v106, 0.5
    %v579 = vmul.f32 %v107, 0.5
    %v580 = vadd.f32 %v564, %v454
    %v581 = vadd.f32 %v565, %v457
    %v582 = vadd.f32 %v566, %v462
    %v583 = vadd.f32 %v567, %v465
    %v584 = vadd.f32 %v568, %v470
    %v585 = vadd.f32 %v569, %v473
    %v586 = vadd.f32 %v570, %v478
    %v587 = vadd.f32 %v571, %v481
    %v588 = vadd.f32 %v572, %v486
    %v589 = vadd.f32 %v573, %v489
    %v590 = vadd.f32 %v574, %v494
    %v591 = vadd.f32 %v575, %v497
    %v592 = vadd.f32 %v576, %v502
    %v593 = vadd.f32 %v577, %v505
    %v594 = vadd.f32 %v578, %v510
    %v595 = vadd.f32 %v579, %v513
    %s596 = scalar_lea.vmem [#allocation8], 128
    %597 = vst [vmem:[%s596] sm:$0xff] %v580
    %598 = vst [vmem:[%s596 + $0x8] sm:$0xff] %v581
    %599 = vst [vmem:[%s596 + $0x10] sm:$0xff] %v582
    %600 = vst [vmem:[%s596 + $0x18] sm:$0xff] %v583
    %601 = vst [vmem:[%s596 + $0x20] sm:$0xff] %v584
    %602 = vst [vmem:[%s596 + $0x28] sm:$0xff] %v585
    %603 = vst [vmem:[%s596 + $0x30] sm:$0xff] %v586
    %604 = vst [vmem:[%s596 + $0x38] sm:$0xff] %v587
    %605 = vst [vmem:[%s596 + $0x40] sm:$0xff] %v588
    %606 = vst [vmem:[%s596 + $0x48] sm:$0xff] %v589
    %607 = vst [vmem:[%s596 + $0x50] sm:$0xff] %v590
    %608 = vst [vmem:[%s596 + $0x58] sm:$0xff] %v591
    %609 = vst [vmem:[%s596 + $0x60] sm:$0xff] %v592
    %610 = vst [vmem:[%s596 + $0x68] sm:$0xff] %v593
    %611 = vst [vmem:[%s596 + $0x70] sm:$0xff] %v594
    %612 = vst [vmem:[%s596 + $0x78] sm:$0xff] %v595
    // Predicated region
    $region30: #{tpu_custom_call.1} parent=1 // pred_check
      _
    $region31: #{tpu_custom_call.1} parent=1 // pred_check_branch
      %614 = sbr.rel (0) target = $region33
    $region32: #{tpu_custom_call.1} parent=1 // pred_region
      %s616 = ssub.s32 4096, 4096
      %617 = vsyncadd [#allocation4], %s616
      %s618 = sshll.u32 [#allocation8], 4
      %s619 = int_to_ptr.vmem [resolvable:$true] %s618
      %624 = dma.vmem_to_hbm [thread:$0]  %s619, 4096, %s4, [#allocation4], 128, 128, 8
    $region33: #{tpu_custom_call.1} parent=1 // pred_fallthru
      _
    // Predicated region
    $region34: #{tpu_custom_call.1} parent=1 // pred_check
      _
    $region35: #{tpu_custom_call.1} parent=1 // pred_check_branch
      %626 = sbr.rel (0) target = $region37
    $region36: #{tpu_custom_call.1} parent=1 // pred_region
      %627 = dma.done [#allocation4], 4096
    $region37: #{tpu_custom_call.1} parent=1 // pred_fallthru
      _
    %628 = vsyncpa [#allocation3], 1
    %629 = vsyncpa [#allocation6], 1
    %630 = vsyncpa [#allocation4], 1

</llo_original>
